<compile_context>
chip_gen: v6e
topology: v6e:2x2x1
jax: 0.10.0
libtpu: 0.0.40
codegen_flags: <defaults>
</compile_context>

<pallas_src>
import functools
import math

import jax
import jax.numpy as jnp
from jax.experimental import pallas as pl
from jax.experimental.pallas import tpu as pltpu


_MIN_PALLAS_BYTES = 512 * 1024        # below this, plain jnp wins (launch cost)
_FALLBACK_VMEM_CAP = 64 * 1024 * 1024  # v7x per-TC VMEM; used only if query fails
_MAX_TILE_R = 2048


def _round_up(x: int, m: int) -> int:
    return ((x + m - 1) // m) * m


def _vmem_budget():
    """(pipeline_budget_bytes, vmem_limit_bytes), per-generation.

    Budgets from the reported VMEM capacity (128 MiB on v5e/v6e, 64 MiB per
    TensorCore on v7x); the conservative 64 MiB floor is used only when the
    hardware query fails.
    """
    cap = _FALLBACK_VMEM_CAP
    try:
        cap = int(pltpu.get_tpu_info().vmem_capacity_bytes)
    except Exception:
        pass
    return int(cap * 0.6), int(cap * 0.85)


def _min_rows(itemsize: int) -> int:
    """Sublane packing multiple: 8 rows f32, 16 bf16, 32 int8/fp8."""
    return max(8, 32 // max(1, itemsize))


def _per_elem_bytes(itemsize: int) -> int:
    """~bytes/element live in the pipeline (in+out double-buffered + temps)."""
    # f32: the astype is a no-op, only the centered copy is extra.
    return 4 * itemsize + (4 if itemsize >= 4 else 8)


def _maybe_buffered(block_shape, index_map, nbuf):
    """BlockSpec with N-deep pipelining; silently degrades if unsupported."""
    try:
        return pl.BlockSpec(block_shape, index_map, pipeline_mode=pl.Buffered(nbuf))
    except Exception:
        return pl.BlockSpec(block_shape, index_map)


def _scale_and_cast(xc, inv, out_dtype):
    # bf16 VALU on v6e/v7x doubles elementwise throughput: do the final scale
    # in packed bf16.  f32 stays in f32 (HBM-bound anyway).
    if jnp.dtype(out_dtype) == jnp.dtype(jnp.bfloat16):
        return xc.astype(jnp.bfloat16) * inv.astype(jnp.bfloat16)
    return (xc * inv).astype(out_dtype)


# ----------------------------------------------------------------------------
# Kernels
# ----------------------------------------------------------------------------

def _ln_row_kernel(x_ref, o_ref, *, eps: float, n_feat: int):
    """Single-pass kernel: a (TILE_R, F) tile holds the whole feature dim."""
    x = x_ref[...].astype(jnp.float32)
    mean = jnp.mean(x, axis=-1, keepdims=True)
    xc = x - mean  # two-pass (centered) variance: matches torch numerics
    var = jnp.sum(xc * xc, axis=-1, keepdims=True) / jnp.float32(n_feat - 1)
    inv = jax.lax.rsqrt(var + jnp.float32(eps))
    o_ref[...] = _scale_and_cast(xc, inv, o_ref.dtype)


def _ln_mid_kernel(x_ref, o_ref, *, eps: float, n_feat: int):
    """Sublane-axis reduction: block (tile_o, RED, tile_i), reduce over RED.

    Used when the reduced dims form a contiguous non-trailing block, avoiding
    the HBM transpose round trip of the generic path.
    """
    x = x_ref[...].astype(jnp.float32)
    mean = jnp.mean(x, axis=-2, keepdims=True)
    xc = x - mean
    var = jnp.sum(xc * xc, axis=-2, keepdims=True) / jnp.float32(n_feat - 1)
    inv = jax.lax.rsqrt(var + jnp.float32(eps))
    o_ref[...] = _scale_and_cast(xc, inv, o_ref.dtype)


def _ln_wide_kernel(x_ref, o_ref, shift_ref, sum_ref, ssq_ref, *,
                    eps: float, n_feat: int):
    """Feature-tiled kernel: grid (row_tiles, 2, feat_tiles).

    Pass p=0 accumulates shifted per-row sums / sums-of-squares into VMEM
    scratch (shifted by the first feature column for cancellation safety);
    pass p=1 finalizes mean / inv-std once (j==0) and streams the output.
    """
    p = pl.program_id(1)
    j = pl.program_id(2)
    x = x_ref[...].astype(jnp.float32)

    @pl.when(jnp.logical_and(p == 0, j == 0))
    def _init():
        sum_ref[...] = jnp.zeros_like(sum_ref)
        ssq_ref[...] = jnp.zeros_like(ssq_ref)
        shift_ref[...] = x[:, 0:1]          # per-row shift against cancellation

    @pl.when(p == 0)
    def _accumulate():
        d = x - shift_ref[...]
        sum_ref[...] += jnp.sum(d, axis=-1, keepdims=True)
        ssq_ref[...] += jnp.sum(d * d, axis=-1, keepdims=True)

    @pl.when(jnp.logical_and(p == 1, j == 0))
    def _finalize_stats():
        n = jnp.float32(n_feat)
        mean_d = sum_ref[...] / n
        var = (ssq_ref[...] - sum_ref[...] * mean_d) / jnp.float32(n_feat - 1)
        var = jnp.maximum(var, 0.0)          # guard residual FP cancellation
        # Hoist: scratch now holds mean / inv-std for the remaining tiles.
        sum_ref[...] = shift_ref[...] + mean_d
        ssq_ref[...] = jax.lax.rsqrt(var + jnp.float32(eps))

    @pl.when(p == 1)
    def _normalize():
        o_ref[...] = _scale_and_cast(x - sum_ref[...], ssq_ref[...], o_ref.dtype)


# ----------------------------------------------------------------------------
# pallas_call wrappers
# ----------------------------------------------------------------------------

def _ln_rows_pallas(x2d, eps, tile_r, vmem_limit):
    R, F = x2d.shape
    kernel = functools.partial(_ln_row_kernel, eps=eps, n_feat=F)
    return pl.pallas_call(
        kernel,
        out_shape=jax.ShapeDtypeStruct((R, F), x2d.dtype),
        grid_spec=pltpu.PrefetchScalarGridSpec(
            num_scalar_prefetch=0,
            grid=(pl.cdiv(R, tile_r),),
            in_specs=[pl.BlockSpec((tile_r, F), lambda i: (i, 0))],
            out_specs=pl.BlockSpec((tile_r, F), lambda i: (i, 0)),
        ),
        compiler_params=pltpu.CompilerParams(
            dimension_semantics=("parallel",),
            vmem_limit_bytes=vmem_limit,
        ),
    )(x2d)


def _ln_mid_pallas(x3d, eps, tile_o, tile_i, vmem_limit):
    O, F, I = x3d.shape
    kernel = functools.partial(_ln_mid_kernel, eps=eps, n_feat=F)
    return pl.pallas_call(
        kernel,
        out_shape=jax.ShapeDtypeStruct((O, F, I), x3d.dtype),
        grid_spec=pltpu.PrefetchScalarGridSpec(
            num_scalar_prefetch=0,
            grid=(pl.cdiv(O, tile_o), pl.cdiv(I, tile_i)),
            in_specs=[pl.BlockSpec((tile_o, F, tile_i), lambda i, j: (i, 0, j))],
            out_specs=pl.BlockSpec((tile_o, F, tile_i), lambda i, j: (i, 0, j)),
        ),
        compiler_params=pltpu.CompilerParams(
            dimension_semantics=("parallel", "parallel"),
            vmem_limit_bytes=vmem_limit,
        ),
    )(x3d)


def _ln_wide_pallas(x2d, eps, tile_r, tile_f, vmem_limit):
    R, F = x2d.shape
    assert F % tile_f == 0 and tile_f % 128 == 0
    kernel = functools.partial(_ln_wide_kernel, eps=eps, n_feat=F)
    return pl.pallas_call(
        kernel,
        out_shape=jax.ShapeDtypeStruct((R, F), x2d.dtype),
        grid_spec=pltpu.PrefetchScalarGridSpec(
            num_scalar_prefetch=0,
            grid=(pl.cdiv(R, tile_r), 2, F // tile_f),
            # 3-deep input buffering hides the cold re-DMA of x(i, 0) at the
            # p=0 -> p=1 pass boundary and at row-tile boundaries.
            in_specs=[_maybe_buffered((tile_r, tile_f),
                                      lambda i, p, j: (i, j), 3)],
            # During the stats pass (p=0) the output block parks at (i, 0) and
            # is not stored; it is fully written at (p=1, j=0) before any
            # block-index change triggers its writeback.
            out_specs=pl.BlockSpec((tile_r, tile_f), lambda i, p, j: (i, p * j)),
            scratch_shapes=[pltpu.VMEM((tile_r, 1), jnp.float32),   # shift
                            pltpu.VMEM((tile_r, 1), jnp.float32),   # sum / mean
                            pltpu.VMEM((tile_r, 1), jnp.float32)],  # ssq / inv
        ),
        compiler_params=pltpu.CompilerParams(
            dimension_semantics=("parallel", "arbitrary", "arbitrary"),
            vmem_limit_bytes=vmem_limit,
        ),
    )(x2d)


# ----------------------------------------------------------------------------
# Tiling / dispatch
# ----------------------------------------------------------------------------

def _layer_norm_2d(x2d, eps, *, force_tiles=None):
    """Row-wise layer norm of a [R, F] slab via Pallas. Returns None if no
    suitable Pallas tiling exists (caller falls back to XLA)."""
    R, F = x2d.shape
    budget, vmem_limit = _vmem_budget()
    itemsize = x2d.dtype.itemsize
    min_rows = _min_rows(itemsize)
    per_elem = _per_elem_bytes(itemsize)
    row_bytes = F * per_elem

    if force_tiles is not None:  # testing hook
        tile_r, tile_f = force_tiles
        if tile_f is not None and tile_f < F:
            return _ln_wide_pallas(x2d, eps, tile_r, tile_f, vmem_limit)
        return _ln_rows_pallas(x2d, eps, tile_r, vmem_limit)

    # Single-pass full-F path: admit against the (per-generation) VMEM limit
    # at the minimum row tile -- the two-pass wide path costs 1.5x HBM traffic.
    if min(R, min_rows) * row_bytes <= int(0.9 * vmem_limit):
        if R <= min_rows:
            tile_r = R
        else:
            tile_r = max(min_rows,
                         min(_MAX_TILE_R, (budget // row_bytes) // min_rows * min_rows))
            # >= 4 grid steps (>= 2 per v7x TensorCore) for DMA/compute overlap.
            per_core = max(min_rows, (-(-R // 4)) // min_rows * min_rows)
            tile_r = min(tile_r, per_core)
        return _ln_rows_pallas(x2d, eps, tile_r, vmem_limit)

    # Feature dim too wide for a full-F block: feature-tiled two-pass path.
    if F % 128 == 0:
        if R <= min_rows:
            tile_r = R
        else:
            tile_r = min(512, max(min_rows, (-(-R // 4)) // min_rows * min_rows))
        tile_f = 0
        tf = 128
        while tf <= F and tile_r * tf * per_elem <= budget:
            if F % tf == 0:
                tile_f = tf
            tf += 128
        if tile_f:
            return _ln_wide_pallas(x2d, eps, tile_r, tile_f, vmem_limit)
    # TODO(synk): masked feature tiles for very wide F not divisible by 128.
    return None


def _layer_norm_mid(x3d, eps):
    """Layer norm over the middle axis of an [O, F, I] slab (sublane-axis
    reduction -- no transpose).  Returns None if no tiling fits VMEM."""
    O, F, I = x3d.shape
    budget, vmem_limit = _vmem_budget()
    itemsize = x3d.dtype.itemsize
    per_elem = _per_elem_bytes(itemsize)
    col_bytes = max(1, F * per_elem)

    if I <= 128:
        tile_i = I
    else:
        max_lane = (budget // col_bytes) // 128 * 128
        if max_lane < 128:
            if 128 * col_bytes > int(0.9 * vmem_limit):
                return None            # reduced dim too large; caller falls back
            max_lane = 128
        tile_i = min(max_lane, (I // 128) * 128)
    if tile_i * col_bytes > int(0.9 * vmem_limit):
        return None

    block_bytes = tile_i * col_bytes
    tile_o = max(1, budget // block_bytes)
    # Keep >= 4 grid steps (>= 2 per v7x TensorCore) when the shape allows.
    steps_i = -(-I // tile_i)
    if steps_i < 4:
        want_o = -(-4 // steps_i)
        tile_o = min(tile_o, max(1, -(-O // want_o)))
    tile_o = min(tile_o, O)
    return _ln_mid_pallas(x3d, eps, tile_o, tile_i, vmem_limit)


# ----------------------------------------------------------------------------
# Public wrapper (matches azula LayerNorm.forward)
# ----------------------------------------------------------------------------

def _layer_norm_jnp(x, dims, eps, n_feat):
    mean = jnp.mean(x, axis=dims, keepdims=True)
    xc = x - mean
    var = jnp.sum(xc * xc, axis=dims, keepdims=True) / (n_feat - 1)
    return xc / jnp.sqrt(var + eps)


def layer_norm(x: jax.Array, dim=-1, eps: float = 1e-5, *,
               force_pallas: bool = False) -> jax.Array:
    ndim = x.ndim
    dims = (dim,) if isinstance(dim, int) else tuple(dim)
    dims = tuple(sorted(set(d % ndim for d in dims)))
    F = math.prod(x.shape[d] for d in dims)
    small = x.size * x.dtype.itemsize < _MIN_PALLAS_BYTES

    contiguous = dims == tuple(range(dims[0], dims[0] + len(dims)))
    trailing = contiguous and dims[-1] == ndim - 1

    if trailing:
        # Lane-axis reduction: view as [R, F] with no data movement.
        R = math.prod(x.shape[:dims[0]])
        if not force_pallas and (small or F < 128):
            return _layer_norm_jnp(x, dims, eps, F)       # XLA wins here
        y2d = _layer_norm_2d(x.reshape(R, F), eps)
        if y2d is None:
            return _layer_norm_jnp(x, dims, eps, F)
        return y2d.reshape(x.shape)

    if contiguous:
        # Contiguous middle block: sublane-axis reduction, no HBM transpose.
        O = math.prod(x.shape[:dims[0]])
        I = math.prod(x.shape[dims[-1] + 1:])
        if not force_pallas and (small or I < 128):
            return _layer_norm_jnp(x, dims, eps, F)
        y3d = _layer_norm_mid(x.reshape(O, F, I), eps)
        if y3d is None:
            return _layer_norm_jnp(x, dims, eps, F)
        return y3d.reshape(x.shape)

    # Non-contiguous reduced dims: transpose fallback.
    # TODO(synk): fold arbitrary permutations into the BlockSpec index_map to
    # avoid the HBM round trip for exotic dim sets.
    if not force_pallas and (small or F < 128):
        return _layer_norm_jnp(x, dims, eps, F)
    keep = tuple(d for d in range(ndim) if d not in dims)
    perm = keep + dims
    R = math.prod(x.shape[d] for d in keep)
    xt = jnp.transpose(x, perm)
    y2d = _layer_norm_2d(xt.reshape(R, F), eps)
    if y2d is None:
        return _layer_norm_jnp(x, dims, eps, F)
    yt = y2d.reshape(tuple(x.shape[d] for d in perm))
    inv_perm = [0] * ndim
    for out_pos, in_pos in enumerate(perm):
        inv_perm[in_pos] = out_pos
    return jnp.transpose(yt, inv_perm)


# ----------------------------------------------------------------------------
# Self-test
# ----------------------------------------------------------------------------

if __name__ == "__main__":
    key = jax.random.PRNGKey(0)
    k1, k2, k3, k4, k5 = jax.random.split(key, 5)

    def ref(x, dims, eps=1e-5):
        dims = (dims,) if isinstance(dims, int) else tuple(dims)
        n = math.prod(x.shape[d] for d in dims)
        mean = jnp.mean(x, axis=dims, keepdims=True)
        var = jnp.sum((x - mean) ** 2, axis=dims, keepdims=True) / (n - 1)
        return (x - mean) / jnp.sqrt(var + eps)

    # 1) Module-sized example (batch=2, seq=8, hidden=32) through the Pallas
    #    row kernel (forced: the auto path routes this tiny input to XLA).
    x1 = jax.random.normal(k1, (2, 8, 32), dtype=jnp.float32)
    y1 = jax.block_until_ready(layer_norm(x1, dim=-1, force_pallas=True))
    assert jnp.allclose(y1, ref(x1, -1), atol=1e-5, rtol=1e-5), "mismatch (row kernel)"

    # 2) Same input through auto-dispatch (small-input XLA fallback).
    y1b = jax.block_until_ready(layer_norm(x1, dim=-1))
    assert jnp.allclose(y1b, ref(x1, -1), atol=1e-5, rtol=1e-5), "mismatch (fallback)"

    # 3) Lane-dense feature dim (hidden=256) + multi-step row grid.
    x2 = jax.random.normal(k2, (2, 8, 256), dtype=jnp.float32)
    y2 = jax.block_until_ready(layer_norm(x2, dim=-1, force_pallas=True))
    assert jnp.allclose(y2, ref(x2, -1), atol=1e-5, rtol=1e-5), "mismatch (lane-dense)"

    # 4) Non-trailing contiguous dim: fused sublane-reduction kernel (no transpose).
    y3 = jax.block_until_ready(layer_norm(x1, dim=1, force_pallas=True))
    assert jnp.allclose(y3, ref(x1, 1), atol=1e-5, rtol=1e-5), "mismatch (mid kernel)"

    # 5) Channel-first NCHW (batch=2, channels=4, spatial=16x16), dim=1.
    x3 = jax.random.normal(k3, (2, 4, 16, 16), dtype=jnp.float32)
    y3b = jax.block_until_ready(layer_norm(x3, dim=1, force_pallas=True))
    assert jnp.allclose(y3b, ref(x3, 1), atol=1e-5, rtol=1e-5), "mismatch (NCHW mid)"

    # 6) Non-contiguous dims (exercises the transpose fallback path).
    y3c = jax.block_until_ready(layer_norm(x1, dim=(0, 2), force_pallas=True))
    assert jnp.allclose(y3c, ref(x1, (0, 2)), atol=1e-5, rtol=1e-5), "mismatch (noncontig)"

    # 7) Feature-tiled wide-F kernel (forced small tiles to exercise the path).
    x4 = jax.random.normal(k4, (16, 512), dtype=jnp.float32)
    y4 = jax.block_until_ready(_layer_norm_2d(x4, 1e-5, force_tiles=(8, 128)))
    assert jnp.allclose(y4, ref(x4, -1), atol=1e-4, rtol=1e-4), "mismatch (wide kernel)"

    # 8) bf16 input: 16-row sublane-packed tiles + packed bf16 final scale.
    x5 = jax.random.normal(k5, (4, 8, 256), dtype=jnp.bfloat16)
    y5 = jax.block_until_ready(layer_norm(x5, dim=-1, force_pallas=True))
    y5_ref = ref(x5.astype(jnp.float32), -1)
    assert jnp.allclose(y5.astype(jnp.float32), y5_ref, atol=5e-2, rtol=5e-2), \
        "mismatch (bf16 row kernel)"

    print("KERNEL_OK")
</pallas_src>

<mosaic_0001>
module attributes {stable_mosaic.version = 11 : i64} {
  func.func @_ln_row_kernel(%arg0: i32, %arg1: memref<8x32xf32, #tpu.memory_space<vmem>>, %arg2: memref<8x32xf32, #tpu.memory_space<vmem>>) attributes {dimension_semantics = [#tpu.dimension_semantics<parallel>], iteration_bounds = array<i64: 2>, scalar_prefetch = 0 : i64, scratch_operands = 0 : i64, tpu.core_type = #tpu.core_type<tc>, window_params = [{transform_indices = @transform_0, window_bounds = array<i64: 8, 32>}, {transform_indices = @transform_1, window_bounds = array<i64: 8, 32>}]} {
    %c0 = arith.constant 0 : index
    %c0_0 = arith.constant 0 : index
    %0 = vector.load %arg1[%c0, %c0_0] : memref<8x32xf32, #tpu.memory_space<vmem>>, vector<8x32xf32>
    %cst = arith.constant dense<0.000000e+00> : vector<8xf32>
    %1 = vector.multi_reduction <add>, %0, %cst [1] : vector<8x32xf32> to vector<8xf32>
    %2 = vector.shape_cast %1 : vector<8xf32> to vector<8x1xf32>
    %cst_1 = arith.constant 3.200000e+01 : f32
    %3 = vector.broadcast %cst_1 : f32 to vector<8x1xf32>
    %4 = arith.divf %2, %3 : vector<8x1xf32>
    %5 = vector.broadcast %4 : vector<8x1xf32> to vector<8x32xf32>
    %6 = arith.subf %0, %5 : vector<8x32xf32>
    %7 = arith.mulf %6, %6 : vector<8x32xf32>
    %cst_2 = arith.constant dense<0.000000e+00> : vector<8xf32>
    %8 = vector.multi_reduction <add>, %7, %cst_2 [1] : vector<8x32xf32> to vector<8xf32>
    %9 = vector.shape_cast %8 : vector<8xf32> to vector<8x1xf32>
    %cst_3 = arith.constant 3.100000e+01 : f32
    %10 = vector.broadcast %cst_3 : f32 to vector<8x1xf32>
    %11 = arith.divf %9, %10 : vector<8x1xf32>
    %cst_4 = arith.constant 9.99999974E-6 : f32
    %12 = vector.broadcast %cst_4 : f32 to vector<8x1xf32>
    %13 = arith.addf %11, %12 : vector<8x1xf32>
    %14 = math.rsqrt %13 : vector<8x1xf32>
    %15 = vector.broadcast %14 : vector<8x1xf32> to vector<8x32xf32>
    %16 = arith.mulf %6, %15 : vector<8x32xf32>
    %c0_5 = arith.constant 0 : index
    %c0_6 = arith.constant 0 : index
    %17 = vector.load %arg2[%c0_5, %c0_6] : memref<8x32xf32, #tpu.memory_space<vmem>>, vector<8x32xf32>
    tpu.vector_store %arg2[%c0_5, %c0_6], %16 {strides = array<i32>} : memref<8x32xf32, #tpu.memory_space<vmem>>, vector<8x32xf32>,
    return
  }
  func.func @transform_0(%arg0: i32) -> (i32, i32) {
    %c0_i32 = arith.constant 0 : i32
    %c0_i32_0 = arith.constant 0 : i32
    return %arg0, %c0_i32 : i32, i32
  }
  func.func @transform_1(%arg0: i32) -> (i32, i32) {
    %c0_i32 = arith.constant 0 : i32
    %c0_i32_0 = arith.constant 0 : i32
    return %arg0, %c0_i32 : i32, i32
  }
}

</mosaic_0001>

<llo_original>
// kernel: tpu_custom_call.1
$region0: #{tpu_custom_call.1}
  #allocation0 [shape = 'u32[]', space=smem, size = 0x4, offset = 0x4, fixed_abs, tag = 'smem constant byte address 0x4 - core index']
  #allocation1 [shape = 'u32[144,128]{1,0:T(1,128)}', space=vmem, size = 0x12000, scoped, tag = 'internal scratch']
  %s0 = inlined_call_operand.hbm [shape: f32[16,32], index: 0, kind: input, shape index: {}]
  %s1 = inlined_call_operand.hbm [shape: f32[16,32], index: 1, kind: output, shape index: {}]
  %s2 = sld [smem:[#allocation0]]
  $region41: #{tpu_custom_call.1} parent=0
    _
  %s4 = ssub.s32 1, %s2
  %s5 = scalar_select 0, %s4, %s2
  $region1: #{tpu_custom_call.1} parent=0
    #allocation2 [shape = 'u8[8192]{0}', space=vmem, size = 0x2000, scoped, tag = 'input window, operand 0']
    #allocation3 [shape = 's32[2]{0}', space=sflag, size = 0x8, scoped, tag = 'scoped memory for tpu_custom_call.1']
    #allocation4 [shape = 's32[2]{0}', space=sflag, size = 0x8, scoped, tag = 'scoped memory for tpu_custom_call.1']
    #allocation5 [shape = 'u8[8192]{0}', space=vmem, size = 0x2000, scoped, tag = 'output window, operand 0']
    %6 = vsyncpa [#allocation3], 0
    %s7 = scalar_lea.sflag [#allocation3], 1
    %8 = vsyncpa %s7, 0
    %9 = vsyncpa [#allocation4], 0
    %s10 = scalar_lea.sflag [#allocation4], 1
    %11 = vsyncpa %s10, 0
    loop: start=0, step=1, limit=4
    $region2: #{tpu_custom_call.1} parent=1 // loop_pre_header
      _
    $region3: #{tpu_custom_call.1} parent=1 // loop_header
      %s13 = sphi 0, %s17
      %p14 = scmp.ge.s32.totalorder %s13, 4
      %s23 = sphi 0, %s25
      %s26 = sphi 0, %s23
      %s27 = sphi 0, %s26
      %s43 = sphi 0, %s27
      %s49 = sphi 0, %s51
      %s52 = sphi 0, %s49
      %s53 = sphi 0, %s52
      %s69 = sphi 0, %s53
    $region4: #{tpu_custom_call.1} parent=1 // loop_header_branch
      %16 = sbr.rel (%p14) target = $region8
    $region5: #{tpu_custom_call.1} parent=1 // loop_body
      %s18 = ssub.s32 %s13, 1
      %s19 = ssub.s32 %s13, 2
      %s20 = sadd.s32 %s13, 1
      %s21 = ssub.s32 %s13, %s20
      %p22 = scmp.eq.s32.totalorder %s21, 0
      %s24 = sadd.s32 %s23, 1
      %s25 = scalar_select %p22, %s23, %s24
      %p28 = pneg %p22
      %p29 = scmp.eq.s32.totalorder %s13, 1
      %p30 = por %p28, %p29
      %p31 = scmp.ne.s32.totalorder %s23, %s26
      %p32 = scmp.eq.s32.totalorder %s13, 0
      %p33 = por %p31, %p32
      %p34 = scmp.ne.s32.totalorder %s23, %s26
      %p35 = scmp.eq.s32.totalorder %s18, 1
      %p36 = por %p34, %p35
      %p37 = scmp.ne.s32.totalorder %s26, %s27
      %p38 = scmp.eq.s32.totalorder %s18, 0
      %p39 = por %p37, %p38
      %p40 = scmp.ne.s32.totalorder %s26, %s27
      %p41 = scmp.eq.s32.totalorder %s19, 1
      %p42 = por %p40, %p41
      %p44 = scmp.ne.s32.totalorder %s27, %s43
      %p45 = scmp.eq.s32.totalorder %s19, 0
      %p46 = por %p44, %p45
      %s47 = ssub.s32 %s13, %s20
      %p48 = scmp.eq.s32.totalorder %s47, 0
      %s50 = sadd.s32 %s49, 1
      %s51 = scalar_select %p48, %s49, %s50
      %p54 = pneg %p48
      %p55 = scmp.eq.s32.totalorder %s13, 1
      %p56 = por %p54, %p55
      %p57 = scmp.ne.s32.totalorder %s49, %s52
      %p58 = scmp.eq.s32.totalorder %s13, 0
      %p59 = por %p57, %p58
      %p60 = scmp.ne.s32.totalorder %s49, %s52
      %p61 = scmp.eq.s32.totalorder %s18, 1
      %p62 = por %p60, %p61
      %p63 = scmp.ne.s32.totalorder %s52, %s53
      %p64 = scmp.eq.s32.totalorder %s18, 0
      %p65 = por %p63, %p64
      %p66 = scmp.ne.s32.totalorder %s52, %s53
      %p67 = scmp.eq.s32.totalorder %s19, 1
      %p68 = por %p66, %p67
      %p70 = scmp.ne.s32.totalorder %s53, %s69
      %p71 = scmp.eq.s32.totalorder %s19, 0
      %p72 = por %p70, %p71
      %p73 = scmp.le.s32.totalorder 1, %s13
      %p74 = scmp.lt.s32.totalorder %s13, 3
      %p75 = pnand %p73, %p74
      %p76 = pneg %p75
      // Predicated region
      $region9: #{tpu_custom_call.1} parent=5 // pred_check
        _
      $region10: #{tpu_custom_call.1} parent=5 // pred_check_branch
        %78 = sbr.rel (%p75) target = $region12
      $region11: #{tpu_custom_call.1} parent=5 // pred_region
        %s79 = ssub.s32 %s13, 1
      $region12: #{tpu_custom_call.1} parent=5 // pred_fallthru
        _
      %p80 = scmp.lt.s32.totalorder %s13, 2
      // Predicated region
      $region13: #{tpu_custom_call.1} parent=5 // pred_check
        %p81 = pneg %p80
      $region14: #{tpu_custom_call.1} parent=5 // pred_check_branch
        %83 = sbr.rel (%p81) target = $region16
      $region15: #{tpu_custom_call.1} parent=5 // pred_region
        // Predicated region
        $region17: #{tpu_custom_call.1} parent=15 // pred_check
          %p84 = pneg %p33
        $region18: #{tpu_custom_call.1} parent=15 // pred_check_branch
          %86 = sbr.rel (%p84) target = $region20
        $region19: #{tpu_custom_call.1} parent=15 // pred_region
          %s87 = sand.u32 %s23, 1
          %s88 = scalar_lea.sflag [#allocation3], %s87
          %s89 = sand.u32 %s23, 1
          %s90 = smul.addr %s89, 8
          %s91 = scalar_lea.vmem [#allocation2], %s90
          %s93 = ssub.s32 128, 128
          %94 = vsyncadd %s88, %s93
          %s95 = smul.addr %s13, 128
          %s96 = scalar_lea.hbm %s0, %s95
          %s98 = sshll.u32 %s91, 4
          %s99 = int_to_ptr.vmem [resolvable:$true] %s98
          %101 = dma.hbm_to_vmem [thread:$0]  %s96, 128, %s99, %s88
        $region20: #{tpu_custom_call.1} parent=15 // pred_fallthru
          _
      $region16: #{tpu_custom_call.1} parent=5 // pred_fallthru
        _
      %p102 = scmp.le.s32.totalorder 1, %s13
      %p103 = scmp.lt.s32.totalorder %s13, 3
      %p104 = pnand %p102, %p103
      %p105 = pneg %p104
      // Predicated region
      $region21: #{tpu_custom_call.1} parent=5 // pred_check
        _
      $region22: #{tpu_custom_call.1} parent=5 // pred_check_branch
        %107 = sbr.rel (%p104) target = $region24
      $region23: #{tpu_custom_call.1} parent=5 // pred_region
        %s108 = ssub.s32 %s13, 1
        %s109 = sand.u32 %s26, 1
        %s110 = scalar_lea.sflag [#allocation3], %s109
        %s111 = sand.u32 %s26, 1
        %s112 = smul.addr %s111, 8
        %s113 = scalar_lea.vmem [#allocation2], %s112
        // Predicated region
        $region25: #{tpu_custom_call.1} parent=23 // pred_check
          %p114 = pneg %p39
        $region26: #{tpu_custom_call.1} parent=23 // pred_check_branch
          %116 = sbr.rel (%p114) target = $region28
        $region27: #{tpu_custom_call.1} parent=23 // pred_region
          %117 = dma.done %s110, 128
        $region28: #{tpu_custom_call.1} parent=23 // pred_fallthru
          _
        %s118 = sand.u32 %s26, 1
        %s119 = scalar_lea.sflag [#allocation3], %s118
        %s120 = sand.u32 %s26, 1
        %s121 = smul.addr %s120, 8
        %s122 = scalar_lea.vmem [#allocation2], %s121
        %p123 = pneg %p39
        %p124 = pneg %p36
        %p125 = pneg %p65
        %p126 = pneg %p62
        %s127 = sand.u32 %s52, 1
        %s128 = scalar_lea.sflag [#allocation4], %s127
        %s129 = sand.u32 %s52, 1
        %s130 = smul.addr %s129, 8
        %s131 = scalar_lea.vmem [#allocation5], %s130
        %v132 = vld [vmem:[%s113] sm:$0xff]
        %vm133 = vcmask 261120
        %v134 = vsel %vm133, %v132, 0.0
        %135 = vadd.xlane.f32.xlu0 %v134
        %v136 = vpop.xlane.xlu0 %135
        %v137 = vrcp.pop 32.0
        %v138 = vmul.f32 %v136, %v137
        %v139 = vsub.f32 %v132, %v138
        %v140 = vmul.f32 %v139, %v139
        %v141 = vsel %vm133, %v140, 0.0
        %142 = vadd.xlane.f32.xlu0 %v141
        %v143 = vpop.xlane.xlu0 %142
        %v144 = vrcp.pop 31.0
        %v145 = vmul.f32 %v143, %v144
        %v146 = vadd.f32 %v145, 1e-05
        %v147 = vrsqrt.pop %v146
        %v148 = vmul.f32 %v139, %v147
        %149 = vst.msk [vmem:[%s131] sm:$0xff] %vm133, %v148
        %s150 = sand.u32 %s52, 1
        %s151 = scalar_lea.sflag [#allocation4], %s150
        %s152 = sand.u32 %s52, 1
        %s153 = smul.addr %s152, 8
        %s154 = scalar_lea.vmem [#allocation5], %s153
        // Predicated region
        $region29: #{tpu_custom_call.1} parent=23 // pred_check
          %p155 = pneg %p62
        $region30: #{tpu_custom_call.1} parent=23 // pred_check_branch
          %157 = sbr.rel (%p155) target = $region32
        $region31: #{tpu_custom_call.1} parent=23 // pred_region
          %s159 = ssub.s32 128, 128
          %160 = vsyncadd %s151, %s159
          %s161 = smul.addr %s18, 128
          %s162 = scalar_lea.hbm %s1, %s161
          %s164 = sshll.u32 %s154, 4
          %s165 = int_to_ptr.vmem [resolvable:$true] %s164
          %167 = dma.vmem_to_hbm [thread:$0]  %s165, 128, %s162, %s151
        $region32: #{tpu_custom_call.1} parent=23 // pred_fallthru
          _
      $region24: #{tpu_custom_call.1} parent=5 // pred_fallthru
        _
      %p168 = scmp.le.s32.totalorder 2, %s13
      // Predicated region
      $region33: #{tpu_custom_call.1} parent=5 // pred_check
        %p169 = pneg %p168
      $region34: #{tpu_custom_call.1} parent=5 // pred_check_branch
        %171 = sbr.rel (%p169) target = $region36
      $region35: #{tpu_custom_call.1} parent=5 // pred_region
        %s172 = ssub.s32 %s13, 2
        // Predicated region
        $region37: #{tpu_custom_call.1} parent=35 // pred_check
          %p173 = pneg %p68
        $region38: #{tpu_custom_call.1} parent=35 // pred_check_branch
          %175 = sbr.rel (%p173) target = $region40
        $region39: #{tpu_custom_call.1} parent=35 // pred_region
          %s176 = sand.u32 %s53, 1
          %s177 = scalar_lea.sflag [#allocation4], %s176
          %s178 = sand.u32 %s53, 1
          %s179 = smul.addr %s178, 8
          %s180 = scalar_lea.vmem [#allocation5], %s179
          %181 = dma.done %s177, 128
        $region40: #{tpu_custom_call.1} parent=35 // pred_fallthru
          _
      $region36: #{tpu_custom_call.1} parent=5 // pred_fallthru
        _
    $region6: #{tpu_custom_call.1} parent=1 // loop_footer
      %s17 = sadd.s32 1, %s13
    $region7: #{tpu_custom_call.1} parent=1 // loop_footer_branch
      %12 = sbr.rel target = $region3
    $region8: #{tpu_custom_call.1} parent=1 // loop_exit
      _
    %182 = vsyncpa [#allocation3], 1
    %s183 = scalar_lea.sflag [#allocation3], 1
    %184 = vsyncpa %s183, 1
    %185 = vsyncpa [#allocation4], 1
    %s186 = scalar_lea.sflag [#allocation4], 1
    %187 = vsyncpa %s186, 1

</llo_original>
